<compile_context>
chip_gen: v7x
topology: tpu7x:2x2x1
jax: 0.10.0
libtpu: 0.0.40
codegen_flags: <defaults>
</compile_context>

<pallas_src>
import math
import functools

import jax
import jax.numpy as jnp
from jax.experimental import pallas as pl
from jax.experimental.pallas import tpu as pltpu


# ---------------------------------------------------------------------------
# Sinusoidal table, same formula as the torch __init__.
# ---------------------------------------------------------------------------
def build_pe_table(max_len: int, d_model: int, dtype=jnp.float32) -> jnp.ndarray:
    position = jnp.arange(max_len, dtype=jnp.float32)[:, None]               # (L, 1)
    div_term = jnp.exp(
        jnp.arange(0, d_model, 2, dtype=jnp.float32)
        * -(math.log(10000.0) / d_model)
    )                                                                         # (D/2,)
    angles = position * div_term                                              # (L, D/2)
    pe = jnp.zeros((max_len, d_model), dtype=jnp.float32)
    pe = pe.at[:, 0::2].set(jnp.sin(angles))
    pe = pe.at[:, 1::2].set(jnp.cos(angles))
    return pe[None].astype(dtype)                                             # (1, L, D)


# ---------------------------------------------------------------------------
# Kernel: pure VPU elementwise scale + (broadcast) add.
# ---------------------------------------------------------------------------
def _pos_enc_kernel(x_ref, pe_ref, out_ref, *, xscale):
    out_ref[...] = x_ref[...] * xscale + pe_ref[...]


_DEFAULT_BLOCK_BYTES = 4 * 1024 * 1024      # per-block target (x block)
_VMEM_LIMIT_BYTES = 40 * 1024 * 1024        # explicit scoped-VMEM limit (all gens)
_MIN_PALLAS_BYTES = 256 * 1024              # below this -> plain jnp fast path
_SPLIT_BYTES = 2 * 1024 * 1024              # above this, force >= 2 grid steps (v7x)


def _sublane_multiple(dtype) -> int:
    # Native packed sublane tile: (8,128) f32, (16,128) bf16, (32,128) int8/fp8.
    return {4: 8, 2: 16, 1: 32}.get(jnp.dtype(dtype).itemsize, 8)


def _pick_row_tile(rows: int, row_bytes: int, sub_mult: int, target_bytes: int) -> int:
    """Largest multiple of sub_mult dividing `rows` with tile*row_bytes <= target."""
    if rows % sub_mult != 0:
        return rows                           # full extent (== array dim is legal)
    t = max(sub_mult, min(rows, target_bytes // max(row_bytes, 1)))
    t = max(sub_mult, (t // sub_mult) * sub_mult)
    while rows % t != 0:
        t -= sub_mult
    return t


def _pick_lane_tile(L: int, itemsize: int, sub_rows: int, target_bytes: int) -> int:
    """Largest multiple of 128 dividing L with sub_rows*tile*itemsize <= target."""
    if L % 128 != 0:
        return L                              # full extent (== array dim is legal)
    max_lanes = max(128, target_bytes // (sub_rows * itemsize))
    t = min(L, (max_lanes // 128) * 128)
    while L % t != 0:
        t -= 128
    return t


def positional_encoding_forward(
    x: jnp.ndarray,
    pe_table: jnp.ndarray,
    offset: int = 0,
    *,
    block_bytes: int = _DEFAULT_BLOCK_BYTES,
    min_pallas_bytes: int = _MIN_PALLAS_BYTES,
    donate_x: bool = False,
):
    """Pallas equivalent of PositionalEncoding.forward (eval mode).

    Args:
      x:        (B, T, D) input.
      pe_table: (1, max_len, D) sinusoidal table.
      offset:   static Python int start offset (int-offset torch branch).
      block_bytes:      per-block byte target for tiling.
      min_pallas_bytes: below this total size, skip pallas (fused jnp fast path).
      donate_x: alias x's HBM buffer to the output (caller must not reuse x).

    Returns:
      (out_x, pos_emb): shapes (B, T, D) [x.dtype] and (1, T, D) [pe_table.dtype].
    """
    assert isinstance(offset, int), "offset must be a static Python int"
    B, T, D = x.shape
    assert offset + T <= pe_table.shape[1]
    xscale = math.sqrt(D)

    # Second return value: the table window itself (torch parity, table dtype).
    pos_emb = pe_table[:, offset:offset + T]                                  # (1, T, D)
    pe_k = pos_emb.astype(x.dtype)                                            # add in x.dtype

    itemsize = jnp.dtype(x.dtype).itemsize
    x_bytes = B * T * D * itemsize

    # ---- Tiny-input fast path: launch overhead would dominate; XLA fuses this.
    if x_bytes < min_pallas_bytes:
        return (x * xscale + pe_k).astype(x.dtype), pos_emb

    kernel = functools.partial(_pos_enc_kernel, xscale=xscale)
    sub_mult = _sublane_multiple(x.dtype)
    cparams = pltpu.CompilerParams(
        dimension_semantics=("parallel", "parallel"),
        vmem_limit_bytes=_VMEM_LIMIT_BYTES,
    )
    io_alias = {0: 0} if donate_x else {}

    if D % 128 == 0 and T % sub_mult == 0:
        # ---- Layout B: (B*T, D).  Lane-dense D, sublane-dense time. ----------
        x_flat = x.reshape(B * T, D)                      # metadata-only reshape
        pe_flat = pe_k.reshape(T, D)
        tile_t = _pick_row_tile(T, D * itemsize, sub_mult, block_bytes)
        n_t = T // tile_t
        # v7x: guarantee >= 2 parallel grid steps on non-trivial problems.
        if n_t * B == 1 and x_bytes >= _SPLIT_BYTES and tile_t % (2 * sub_mult) == 0:
            tile_t //= 2
            n_t = T // tile_t
        grid = (n_t, B)   # batch innermost -> pe tile stays VMEM-resident over batch

        out_flat = pl.pallas_call(
            kernel,
            out_shape=jax.ShapeDtypeStruct((B * T, D), x.dtype),
            grid=grid,
            in_specs=[
                pl.BlockSpec((tile_t, D), lambda t, b, n_t=n_t: (b * n_t + t, 0)),
                pl.BlockSpec((tile_t, D), lambda t, b: (t, 0)),   # ignores batch axis
            ],
            out_specs=pl.BlockSpec((tile_t, D),
                                   lambda t, b, n_t=n_t: (b * n_t + t, 0)),
            compiler_params=cparams,
            input_output_aliases=io_alias,
        )(x_flat, pe_flat)
        return out_flat.reshape(B, T, D), pos_emb

    # ---- Layout A (fallback, D not a lane multiple): (B, T*D). --------------
    L = T * D
    x_flat = x.reshape(B, L)
    pe_flat = pe_k.reshape(1, L)
    lane_tile = _pick_lane_tile(L, itemsize, sub_mult, block_bytes)
    batch_tile = _pick_row_tile(B, lane_tile * itemsize, sub_mult, block_bytes)
    n_l, n_b = L // lane_tile, B // batch_tile
    # v7x: guarantee >= 2 parallel grid steps on non-trivial problems.
    if n_l * n_b == 1 and x_bytes >= _SPLIT_BYTES:
        if lane_tile % 256 == 0:
            lane_tile //= 2
        elif batch_tile % (2 * sub_mult) == 0:
            batch_tile //= 2
        n_l, n_b = L // lane_tile, B // batch_tile
    grid = (n_l, n_b)     # batch innermost -> pe tile stays VMEM-resident over batch

    out_flat = pl.pallas_call(
        kernel,
        out_shape=jax.ShapeDtypeStruct((B, L), x.dtype),
        grid=grid,
        in_specs=[
            pl.BlockSpec((batch_tile, lane_tile), lambda l, b: (b, l)),
            pl.BlockSpec((1, lane_tile), lambda l, b: (0, l)),    # ignores batch axis
        ],
        out_specs=pl.BlockSpec((batch_tile, lane_tile), lambda l, b: (b, l)),
        compiler_params=cparams,
        input_output_aliases=io_alias,
    )(x_flat, pe_flat)
    return out_flat.reshape(B, T, D), pos_emb


# ---------------------------------------------------------------------------
# Pure-JAX reference (mirrors the kernel's dtype behaviour).
# ---------------------------------------------------------------------------
def _reference(x, pe_table, offset):
    pe = pe_table[:, offset:offset + x.shape[1]]
    out = (x * math.sqrt(x.shape[2]) + pe.astype(x.dtype)).astype(x.dtype)
    return out, pe


def _check(out, ref, name, atol=1e-5):
    ok = jnp.allclose(out.astype(jnp.float32), ref.astype(jnp.float32), atol=atol)
    assert bool(ok), f"mismatch: {name}"


if __name__ == "__main__":
    keys = jax.random.split(jax.random.PRNGKey(0), 6)

    # --- Case 1: module's streaming shape (B=2, T=8, D=32). ------------------
    B, T, D = 2, 8, 32
    MAX_LEN, OFFSET = 64, 3
    x1 = jax.random.normal(keys[0], (B, T, D), dtype=jnp.float32)
    pe1 = build_pe_table(MAX_LEN, D)
    ref_x1, ref_pe1 = _reference(x1, pe1, OFFSET)

    # 1a: default call -> tiny-input fast path.
    out_x, out_pe = positional_encoding_forward(x1, pe1, offset=OFFSET)
    jax.block_until_ready(out_x)
    _check(out_x, ref_x1, "case1 fast-path x"); _check(out_pe, ref_pe1, "case1 fast-path pe")

    # 1b: same shape forced through the Pallas kernel (layout A, D % 128 != 0).
    out_x, out_pe = positional_encoding_forward(x1, pe1, offset=OFFSET, min_pallas_bytes=0)
    jax.block_until_ready(out_x)
    _check(out_x, ref_x1, "case1 kernel x"); _check(out_pe, ref_pe1, "case1 kernel pe")

    # --- Case 2: layout B ((B*T, D) flatten), default and multi-tile grids. --
    B2, T2, D2 = 4, 192, 256
    MAX_LEN2, OFFSET2 = 512, 17
    x2 = jax.random.normal(keys[1], (B2, T2, D2), dtype=jnp.float32)
    pe2 = build_pe_table(MAX_LEN2, D2)
    ref_x2, ref_pe2 = _reference(x2, pe2, OFFSET2)

    out_x2, out_pe2 = positional_encoding_forward(x2, pe2, offset=OFFSET2)
    jax.block_until_ready(out_x2)
    _check(out_x2, ref_x2, "case2 default x"); _check(out_pe2, ref_pe2, "case2 default pe")

    out_x2b, _ = positional_encoding_forward(x2, pe2, offset=OFFSET2,
                                             block_bytes=64 * 1024)   # tiled grid (3,4)
    jax.block_until_ready(out_x2b)
    _check(out_x2b, ref_x2, "case2 tiled x")

    # --- Case 3: bf16 (dtype-aware 16-row sublane tile, layout B). -----------
    B3, T3, D3 = 2, 32, 256
    MAX_LEN3, OFFSET3 = 128, 5
    x3 = jax.random.normal(keys[2], (B3, T3, D3), dtype=jnp.float32).astype(jnp.bfloat16)
    pe3 = build_pe_table(MAX_LEN3, D3)
    ref_x3, ref_pe3 = _reference(x3, pe3, OFFSET3)
    out_x3, out_pe3 = positional_encoding_forward(x3, pe3, offset=OFFSET3, min_pallas_bytes=0)
    jax.block_until_ready(out_x3)
    _check(out_x3, ref_x3, "case3 bf16 x", atol=2e-2); _check(out_pe3, ref_pe3, "case3 bf16 pe")

    # --- Case 4: layout A with lane tiling (D not a multiple of 128). --------
    B4, T4, D4 = 2, 64, 96
    MAX_LEN4, OFFSET4 = 128, 11
    x4 = jax.random.normal(keys[3], (B4, T4, D4), dtype=jnp.float32)
    pe4 = build_pe_table(MAX_LEN4, D4)
    ref_x4, ref_pe4 = _reference(x4, pe4, OFFSET4)
    out_x4, out_pe4 = positional_encoding_forward(
        x4, pe4, offset=OFFSET4, min_pallas_bytes=0, block_bytes=64 * 1024)
    jax.block_until_ready(out_x4)
    _check(out_x4, ref_x4, "case4 x"); _check(out_pe4, ref_pe4, "case4 pe")

    # --- Case 5: B=1, large enough to trigger the >=2-grid-step split. -------
    B5, T5, D5 = 1, 2048, 256
    MAX_LEN5, OFFSET5 = 4096, 0
    x5 = jax.random.normal(keys[4], (B5, T5, D5), dtype=jnp.float32)
    pe5 = build_pe_table(MAX_LEN5, D5)
    ref_x5, ref_pe5 = _reference(x5, pe5, OFFSET5)
    out_x5, out_pe5 = positional_encoding_forward(x5, pe5, offset=OFFSET5)
    jax.block_until_ready(out_x5)
    _check(out_x5, ref_x5, "case5 x"); _check(out_pe5, ref_pe5, "case5 pe")

    print("KERNEL_OK")
</pallas_src>

<mosaic_0001>
module attributes {stable_mosaic.version = 11 : i64} {
  func.func @_pos_enc_kernel(%arg0: i32, %arg1: i32, %arg2: memref<2x256xf32, #tpu.memory_space<vmem>>, %arg3: memref<1x256xf32, #tpu.memory_space<vmem>>, %arg4: memref<2x256xf32, #tpu.memory_space<vmem>>) attributes {dimension_semantics = [#tpu.dimension_semantics<parallel>, #tpu.dimension_semantics<parallel>], iteration_bounds = array<i64: 1, 1>, scalar_prefetch = 0 : i64, scratch_operands = 0 : i64, tpu.core_type = #tpu.core_type<tc>, window_params = [{transform_indices = @transform_0, window_bounds = array<i64: 2, 256>}, {transform_indices = @transform_1, window_bounds = array<i64: 1, 256>}, {transform_indices = @transform_2, window_bounds = array<i64: 2, 256>}]} {
    %c0 = arith.constant 0 : index
    %c0_0 = arith.constant 0 : index
    %0 = vector.load %arg2[%c0, %c0_0] : memref<2x256xf32, #tpu.memory_space<vmem>>, vector<2x256xf32>
    %cst = arith.constant 5.65685415 : f32
    %1 = vector.broadcast %cst : f32 to vector<2x256xf32>
    %2 = arith.mulf %0, %1 : vector<2x256xf32>
    %c0_1 = arith.constant 0 : index
    %c0_2 = arith.constant 0 : index
    %3 = vector.load %arg3[%c0_1, %c0_2] : memref<1x256xf32, #tpu.memory_space<vmem>>, vector<1x256xf32>
    %4 = vector.broadcast %3 : vector<1x256xf32> to vector<2x256xf32>
    %5 = arith.addf %2, %4 : vector<2x256xf32>
    %c0_3 = arith.constant 0 : index
    %c0_4 = arith.constant 0 : index
    %6 = vector.load %arg4[%c0_3, %c0_4] : memref<2x256xf32, #tpu.memory_space<vmem>>, vector<2x256xf32>
    tpu.vector_store %arg4[%c0_3, %c0_4], %5 {strides = array<i32>} : memref<2x256xf32, #tpu.memory_space<vmem>>, vector<2x256xf32>,
    return
  }
  func.func @transform_0(%arg0: i32, %arg1: i32) -> (i32, i32) {
    %c0_i32 = arith.constant 0 : i32
    return %arg1, %arg0 : i32, i32
  }
  func.func @transform_1(%arg0: i32, %arg1: i32) -> (i32, i32) {
    %c0_i32 = arith.constant 0 : i32
    %c0_i32_0 = arith.constant 0 : i32
    return %c0_i32, %arg0 : i32, i32
  }
  func.func @transform_2(%arg0: i32, %arg1: i32) -> (i32, i32) {
    %c0_i32 = arith.constant 0 : i32
    return %arg1, %arg0 : i32, i32
  }
}

</mosaic_0001>

<llo_original>
// kernel: tpu_custom_call.1
$region0: #{tpu_custom_call.1}
  #allocation0 [shape = 'u32[]', space=smem, size = 0x4, offset = 0x4, fixed_abs, tag = 'smem constant byte address 0x4 - core index']
  #allocation1 [shape = 'u32[144,128]{1,0:T(1,128)}', space=vmem, size = 0x12000, scoped, tag = 'internal scratch']
  %s0 = inlined_call_operand.hbm [shape: f32[2,256], index: 0, kind: input, shape index: {}]
  %s1 = inlined_call_operand.vmem [shape: f32[1,256], index: 1, kind: input, shape index: {}]
  %s2 = inlined_call_operand.hbm [shape: f32[2,256], index: 2, kind: output, shape index: {}]
  %s3 = sld [smem:[#allocation0]]
  $region22: #{tpu_custom_call.1} parent=0
    _
  %s5 = ssub.s32 1, %s3
  %s6 = scalar_select 0, %s5, %s3
  $region1: #{tpu_custom_call.1} parent=0
    #allocation2 [shape = 'u8[2048]{0}', space=vmem, size = 0x800, scoped, tag = 'input window, operand 0, single buffered']
    #allocation3 [shape = 's32[1]{0}', space=sflag, size = 0x4, scoped, tag = 'scoped memory for tpu_custom_call.1']
    #allocation4 [shape = 's32[1]{0}', space=sflag, size = 0x4, scoped, tag = 'scoped memory for tpu_custom_call.1']
    #allocation5 [shape = 'u8[2048]{0}', space=vmem, size = 0x800, scoped, tag = 'output window, operand 0, single buffered']
    %7 = vsyncpa [#allocation3], 0
    %8 = vsyncpa [#allocation4], 0
    // Predicated region
    $region2: #{tpu_custom_call.1} parent=1 // pred_check
      _
    $region3: #{tpu_custom_call.1} parent=1 // pred_check_branch
      %10 = sbr.rel (0) target = $region5
    $region4: #{tpu_custom_call.1} parent=1 // pred_region
      %s12 = ssub.s32 64, 64
      %13 = vsyncadd [#allocation3], %s12
      %s15 = sshll.u32 [#allocation2], 4
      %s16 = int_to_ptr.vmem [resolvable:$true] %s15
      %18 = dma.hbm_to_vmem [thread:$0]  %s0, 64, %s16, [#allocation3]
    $region5: #{tpu_custom_call.1} parent=1 // pred_fallthru
      _
    // Predicated region
    $region6: #{tpu_custom_call.1} parent=1 // pred_check
      _
    $region7: #{tpu_custom_call.1} parent=1 // pred_check_branch
      %20 = sbr.rel (0) target = $region9
    $region8: #{tpu_custom_call.1} parent=1 // pred_region
      _
    $region9: #{tpu_custom_call.1} parent=1 // pred_fallthru
      _
    // Predicated region
    $region10: #{tpu_custom_call.1} parent=1 // pred_check
      _
    $region11: #{tpu_custom_call.1} parent=1 // pred_check_branch
      %22 = sbr.rel (0) target = $region13
    $region12: #{tpu_custom_call.1} parent=1 // pred_region
      %23 = dma.done [#allocation3], 64
    $region13: #{tpu_custom_call.1} parent=1 // pred_fallthru
      _
    %v24 = vld [vmem:[#allocation2] sm:$0xf]
    %v25 = vmul.f32 %v24, 5.656854
    %v26 = vld [vmem:[%s1] sm:$0x3]
    %v28 = vlaneseq
    %v29 = vshrl.u32 %v28, 7
    %v30 = vsub.s32 0, %v29
    %v31 = vrot.slane %v26, %v30
    %v32 = vlaneseq
    %v33 = vshrl.u32 %v32, 7
    %v34 = vsub.s32 1, %v33
    %v35 = vrot.slane %v26, %v34
    %v36 = vcombine.low %v31, %v35
    %v38 = vunpack.c.l.s4 1983009808
    %v39 = vunpack.c.0.s8 %v38
    %v40 = vlaneseq
    %v41 = vshrl.u32 %v40, 7
    %v42 = vsub.s32 %v39, %v41
    %v43 = vrot.slane %v36, %v42
    %v45 = vadd.f32 %v25, %v43
    %46 = vst [vmem:[#allocation5] sm:$0xf] %v45
    // Predicated region
    $region14: #{tpu_custom_call.1} parent=1 // pred_check
      _
    $region15: #{tpu_custom_call.1} parent=1 // pred_check_branch
      %48 = sbr.rel (0) target = $region17
    $region16: #{tpu_custom_call.1} parent=1 // pred_region
      %s50 = ssub.s32 64, 64
      %51 = vsyncadd [#allocation4], %s50
      %s53 = sshll.u32 [#allocation5], 4
      %s54 = int_to_ptr.vmem [resolvable:$true] %s53
      %56 = dma.vmem_to_hbm [thread:$0]  %s54, 64, %s2, [#allocation4]
    $region17: #{tpu_custom_call.1} parent=1 // pred_fallthru
      _
    // Predicated region
    $region18: #{tpu_custom_call.1} parent=1 // pred_check
      _
    $region19: #{tpu_custom_call.1} parent=1 // pred_check_branch
      %58 = sbr.rel (0) target = $region21
    $region20: #{tpu_custom_call.1} parent=1 // pred_region
      %59 = dma.done [#allocation4], 64
    $region21: #{tpu_custom_call.1} parent=1 // pred_fallthru
      _
    %60 = vsyncpa [#allocation3], 1
    %61 = vsyncpa [#allocation4], 1

</llo_original>
